<compile_context>
chip_gen: v7x
topology: tpu7x:2x2x1
jax: 0.10.0
libtpu: 0.0.40
codegen_flags: <defaults>
</compile_context>

<pallas_src>
import jax
import jax.numpy as jnp
from jax import lax
from jax.experimental import pallas as pl
from jax.experimental.pallas import tpu as pltpu


def _round_up(x: int, m: int) -> int:
    return (x + m - 1) // m * m


def _cdiv(a: int, b: int) -> int:
    return (a + b - 1) // b


def _patch_embed_kernel(x_ref, w_ref, b_ref, o_ref):
    # (TM, K) @ (K, E_pad) on the MXU with f32 accumulation; bias add on VPU.
    acc = jnp.dot(x_ref[...], w_ref[...], preferred_element_type=jnp.float32)
    o_ref[...] = (acc + b_ref[...]).astype(o_ref.dtype)


def _choose_m_tiling(M: int, target_tm: int, align: int):
    """Balanced M tiles: low pad waste, aligned TM, even grid for v7x TCs."""
    target_tm = max(int(target_tm), align)
    num_tiles = _cdiv(M, target_tm)
    if M >= 256:
        # Give the two v7x TensorCores at least one tile each (free on
        # single-TC chips: one extra ~0.35us grid step).
        num_tiles = max(num_tiles, 2)
    if num_tiles > 1 and num_tiles % 2:
        num_tiles += 1  # even grid -> balanced megacore sharding
    tm = _round_up(_cdiv(M, num_tiles), align)
    return num_tiles, tm


def patch_embedding_forward(x, weight, bias, patch_size, *,
                            compute_dtype=jnp.bfloat16, out_dtype=None,
                            tile_m=512):
    """x: [B, C, H, W] (NCHW, like torch). weight: [E, C, P, P]. bias: [E].

    Returns [B, N, E] with N = (H//P) * (W//P).
    compute_dtype: MXU operand dtype (default bf16; accumulation stays f32).
    out_dtype: output dtype (default: x.dtype).
    """
    B, C, H, W = x.shape
    E = weight.shape[0]
    P = int(patch_size)
    assert H % P == 0 and W % P == 0, "H and W must be multiples of patch_size"
    nh, nw = H // P, W // P
    N = nh * nw
    K = C * P * P
    M = B * N

    op_dtype = jnp.dtype(x.dtype if compute_dtype is None else compute_dtype)
    out_dtype = jnp.dtype(x.dtype if out_dtype is None else out_dtype)

    # Lane-dense output: pad E to a multiple of 128 (unmasked vst).  K stays
    # unpadded: the K block equals the full array dim, and padded K bytes on
    # the streamed operand would be pure wasted HBM bandwidth.
    E_pad = _round_up(E, 128)

    # Sublane alignment for the M tile: 8 rows (32-bit) / 16 rows (16-bit).
    align = 8 if op_dtype.itemsize >= 4 else 16
    num_tiles, TM = _choose_m_tiling(M, tile_m, align)
    M_pad = num_tiles * TM

    # --- wrapper glue: im2col in the (c, ph, pw) flatten order ---------------
    # Cast to the compute dtype FIRST so the relayout (and any materialization
    # XLA does not fuse into the kernel's input DMA) moves half the bytes.
    xp = x.astype(op_dtype).reshape(B, C, nh, P, nw, P)
    xp = xp.transpose(0, 2, 4, 1, 3, 5)            # [B, nh, nw, C, P, P]
    patches = xp.reshape(M, K)                     # [M, K]
    if M_pad != M:
        patches = jnp.pad(patches, ((0, M_pad - M), (0, 0)))

    w_mat = weight.reshape(E, K).T.astype(op_dtype)          # [K, E]
    if E_pad != E:
        w_mat = jnp.pad(w_mat, ((0, 0), (0, E_pad - E)))
    b_mat = bias.astype(jnp.float32).reshape(1, E)
    if E_pad != E:
        b_mat = jnp.pad(b_mat, ((0, 0), (0, E_pad - E)))

    op_isz = op_dtype.itemsize
    out_isz = out_dtype.itemsize

    # Per-step VMEM footprint: patches + output are double-buffered by the
    # pipeline; weight/bias are Buffered(1) (single buffer, fetched once).
    vmem_need = (2 * TM * K * op_isz            # patches stream (2 buffers)
                 + K * E_pad * op_isz           # resident weight (1 buffer)
                 + E_pad * 4                    # bias (f32)
                 + 2 * TM * E_pad * out_isz)    # output (2 buffers)
    # Generous headroom, floored at 8 MiB, capped at 48 MiB (v7x-safe; also
    # overrides v5e's 16 MiB default scoped limit when a large TM needs it).
    vmem_limit = int(min(max(2 * vmem_need, 8 << 20), 48 << 20))

    cost = pl.CostEstimate(
        flops=2 * M_pad * K * E_pad,
        transcendentals=0,
        bytes_accessed=(M_pad * K * op_isz          # patches (streamed)
                        + K * E_pad * op_isz        # weight (resident)
                        + E_pad * 4                 # bias
                        + M_pad * E_pad * out_isz), # output
    )

    out = pl.pallas_call(
        _patch_embed_kernel,
        out_shape=jax.ShapeDtypeStruct((M_pad, E_pad), out_dtype),
        grid=(num_tiles,),
        in_specs=[
            # Streamed over M; double-buffered by the BlockSpec pipeline.
            pl.BlockSpec((TM, K), lambda i: (i, 0)),
            # Resident operands: constant block index, fetched once; a single
            # VMEM buffer is enough (frees K*E_pad bytes for bigger tiles).
            pl.BlockSpec((K, E_pad), lambda i: (0, 0),
                         pipeline_mode=pl.Buffered(1)),
            pl.BlockSpec((1, E_pad), lambda i: (0, 0),
                         pipeline_mode=pl.Buffered(1)),
        ],
        out_specs=pl.BlockSpec((TM, E_pad), lambda i: (i, 0)),
        compiler_params=pltpu.CompilerParams(
            # "parallel": M tiles shard across both v7x TensorCores.
            dimension_semantics=("parallel",),
            # Let XLA fuse the cast/transpose/reshape/pad producers into the
            # kernel's input DMA where it can, avoiding an HBM round trip.
            allow_input_fusion=[True, True, True],
            vmem_limit_bytes=vmem_limit,
        ),
        cost_estimate=cost,
    )(patches, w_mat, b_mat)

    if M_pad != M or E_pad != E:
        out = out[:M, :E]
    return out.reshape(B, N, E)


def _reference_forward(x, weight, bias, patch_size):
    """Pure-JAX reference using the actual strided conv (NCHW)."""
    y = lax.conv_general_dilated(
        x, weight,
        window_strides=(patch_size, patch_size),
        padding="VALID",
        dimension_numbers=("NCHW", "OIHW", "NCHW"),
    ) + bias.reshape(1, -1, 1, 1)
    B, E, hh, ww = y.shape
    return y.reshape(B, E, hh * ww).transpose(0, 2, 1)


if __name__ == "__main__":
    fwd = jax.jit(patch_embedding_forward,
                  static_argnames=("patch_size", "compute_dtype", "out_dtype",
                                   "tile_m"))

    # --- config 1: small shapes consistent with the module ------------------
    # B=2, C=4, H=W=16, patch=4, embd=32  -> N=16, K=64, M=32 (single tile)
    B, C, H, W = 2, 4, 16, 16
    P, E = 4, 32
    key = jax.random.PRNGKey(0)
    kx, kw, kb = jax.random.split(key, 3)
    x = jax.random.normal(kx, (B, C, H, W), dtype=jnp.float32)
    weight = jax.random.normal(kw, (E, C, P, P), dtype=jnp.float32) * 0.05
    bias = jax.random.normal(kb, (E,), dtype=jnp.float32) * 0.05
    ref = _reference_forward(x, weight, bias, P)

    # Default path: bf16 operands, f32 accumulation, f32 output.
    out = jax.block_until_ready(fwd(x, weight, bias, patch_size=P))
    assert out.shape == (B, (H // P) * (W // P), E)
    assert out.dtype == x.dtype
    assert jnp.allclose(out, ref, atol=3e-2, rtol=3e-2)

    # Full-f32 operand path (tight tolerance).
    out_f32 = jax.block_until_ready(
        fwd(x, weight, bias, patch_size=P, compute_dtype=jnp.float32))
    assert jnp.allclose(out_f32, ref, atol=1e-4, rtol=1e-4)

    # --- config 2: exercises a multi-tile, even grid (M=512 -> 2 tiles) -----
    B2, C2, H2, W2 = 2, 4, 64, 64
    key2 = jax.random.PRNGKey(0)
    kx2, kw2, kb2 = jax.random.split(key2, 3)
    x2 = jax.random.normal(kx2, (B2, C2, H2, W2), dtype=jnp.float32)
    w2 = jax.random.normal(kw2, (E, C2, P, P), dtype=jnp.float32) * 0.05
    b2 = jax.random.normal(kb2, (E,), dtype=jnp.float32) * 0.05
    ref2 = _reference_forward(x2, w2, b2, P)
    out2 = jax.block_until_ready(fwd(x2, w2, b2, patch_size=P))
    assert out2.shape == (B2, (H2 // P) * (W2 // P), E)
    assert jnp.allclose(out2, ref2, atol=3e-2, rtol=3e-2)

    print("KERNEL_OK")
</pallas_src>

<mosaic_0001>
module attributes {stable_mosaic.version = 11 : i64} {
  func.func @_patch_embed_kernel(%arg0: i32, %arg1: memref<32x64xbf16, #tpu.memory_space<vmem>>, %arg2: memref<64x128xbf16, #tpu.memory_space<vmem>>, %arg3: memref<1x128xf32, #tpu.memory_space<vmem>>, %arg4: memref<32x128xf32, #tpu.memory_space<vmem>>) attributes {dimension_semantics = [#tpu.dimension_semantics<parallel>], iteration_bounds = array<i64: 1>, scalar_prefetch = 0 : i64, scratch_operands = 0 : i64, tpu.core_type = #tpu.core_type<tc>, window_params = [{transform_indices = @transform_0, window_bounds = array<i64: 32, 64>}, {pipeline_mode = #tpu.pipeline_mode<synchronous>, transform_indices = @transform_1, window_bounds = array<i64: 64, 128>}, {pipeline_mode = #tpu.pipeline_mode<synchronous>, transform_indices = @transform_2, window_bounds = array<i64: 1, 128>}, {transform_indices = @transform_3, window_bounds = array<i64: 32, 128>}]} {
    %c0 = arith.constant 0 : index
    %c0_0 = arith.constant 0 : index
    %0 = vector.load %arg1[%c0, %c0_0] : memref<32x64xbf16, #tpu.memory_space<vmem>>, vector<32x64xbf16>
    %c0_1 = arith.constant 0 : index
    %c0_2 = arith.constant 0 : index
    %1 = vector.load %arg2[%c0_1, %c0_2] : memref<64x128xbf16, #tpu.memory_space<vmem>>, vector<64x128xbf16>
    %cst = arith.constant dense<0.000000e+00> : vector<32x128xf32>
    %2 = tpu.matmul %0, %1, %cst {dimension_numbers = #tpu.dot_dimension_numbers<[1], [0], [0], [1], [0, 0, 1, 1], [], []>} : vector<32x64xbf16>, vector<64x128xbf16>, vector<32x128xf32> -> vector<32x128xf32>
    %c0_3 = arith.constant 0 : index
    %c0_4 = arith.constant 0 : index
    %3 = vector.load %arg3[%c0_3, %c0_4] : memref<1x128xf32, #tpu.memory_space<vmem>>, vector<1x128xf32>
    %4 = vector.broadcast %3 : vector<1x128xf32> to vector<32x128xf32>
    %5 = arith.addf %2, %4 : vector<32x128xf32>
    %c0_5 = arith.constant 0 : index
    %c0_6 = arith.constant 0 : index
    %6 = vector.load %arg4[%c0_5, %c0_6] : memref<32x128xf32, #tpu.memory_space<vmem>>, vector<32x128xf32>
    tpu.vector_store %arg4[%c0_5, %c0_6], %5 {strides = array<i32>} : memref<32x128xf32, #tpu.memory_space<vmem>>, vector<32x128xf32>,
    return
  }
  func.func @transform_0(%arg0: i32) -> (i32, i32) {
    %c0_i32 = arith.constant 0 : i32
    %c0_i32_0 = arith.constant 0 : i32
    return %arg0, %c0_i32 : i32, i32
  }
  func.func @transform_1(%arg0: i32) -> (i32, i32) {
    %c0_i32 = arith.constant 0 : i32
    %c0_i32_0 = arith.constant 0 : i32
    %c0_i32_1 = arith.constant 0 : i32
    return %c0_i32, %c0_i32_0 : i32, i32
  }
  func.func @transform_2(%arg0: i32) -> (i32, i32) {
    %c0_i32 = arith.constant 0 : i32
    %c0_i32_0 = arith.constant 0 : i32
    %c0_i32_1 = arith.constant 0 : i32
    return %c0_i32, %c0_i32_0 : i32, i32
  }
  func.func @transform_3(%arg0: i32) -> (i32, i32) {
    %c0_i32 = arith.constant 0 : i32
    %c0_i32_0 = arith.constant 0 : i32
    return %arg0, %c0_i32 : i32, i32
  }
}

</mosaic_0001>

<llo_original>
// kernel: patch_embedding_forward.2
$region0: #{patch_embedding_forward.2}
  #allocation0 [shape = 'u32[]', space=smem, size = 0x4, offset = 0x4, fixed_abs, tag = 'smem constant byte address 0x4 - core index']
  #allocation1 [shape = 'u32[144,128]{1,0:T(1,128)}', space=vmem, size = 0x12000, scoped, tag = 'internal scratch']
  #allocation2 [shape = 'u32[2048]{0}', space=vmem, size = 0x2000, scoped, tag = 'scoped memory for patch_embedding_forward.2']
  #allocation3 [shape = 'u32[2048]{0}', space=vmem, size = 0x2000, scoped, tag = 'scoped memory for patch_embedding_forward.2']
  #allocation4 [shape = 'u32[2048]{0}', space=vmem, size = 0x2000, scoped, tag = 'scoped memory for patch_embedding_forward.2']
  #allocation5 [shape = 'u32[2048]{0}', space=vmem, size = 0x2000, scoped, tag = 'scoped memory for patch_embedding_forward.2']
  #allocation6 [shape = 'u32[2048]{0}', space=vmem, size = 0x2000, scoped, tag = 'scoped memory for patch_embedding_forward.2']
  #allocation7 [shape = 'u32[2048]{0}', space=vmem, size = 0x2000, scoped, tag = 'scoped memory for patch_embedding_forward.2']
  #allocation8 [shape = 'u32[2048]{0}', space=vmem, size = 0x2000, scoped, tag = 'scoped memory for patch_embedding_forward.2']
  #allocation9 [shape = 'u32[2048]{0}', space=vmem, size = 0x2000, scoped, tag = 'scoped memory for patch_embedding_forward.2']
  #allocation10 [shape = 'u32[2048]{0}', space=vmem, size = 0x2000, scoped, tag = 'scoped memory for patch_embedding_forward.2']
  #allocation11 [shape = 'u32[2048]{0}', space=vmem, size = 0x2000, scoped, tag = 'scoped memory for patch_embedding_forward.2']
  %s0 = inlined_call_operand.vmem [shape: bf16[32,64], index: 0, kind: input, shape index: {}]
  %s1 = inlined_call_operand.vmem [shape: bf16[64,32], index: 1, kind: input, shape index: {}]
  %s2 = inlined_call_operand.<no memory space> [shape: bf16[], index: 2, kind: input, shape index: {}]
  %s3 = inlined_call_operand.vmem [shape: f32[1,32], index: 3, kind: input, shape index: {}]
  %s4 = inlined_call_operand.<no memory space> [shape: f32[], index: 4, kind: input, shape index: {}]
  %s5 = inlined_call_operand.hbm [shape: f32[32,128], index: 5, kind: output, shape index: {}]
  %s6 = sld [smem:[#allocation0]]
  $region22: #{patch_embedding_forward.2} parent=0
    _
  %s8 = ssub.s32 1, %s6
  %s9 = scalar_select 0, %s8, %s6
  %v10 = vstv %s2
  %v11 = vunpack.i.l.bf16 %v10
  %v13 = vunpack.i.h.bf16 %v10
  %v15 = vstv %s4
  $region1: #{patch_embedding_forward.2} parent=0
    #allocation12 [shape = 'u8[16384]{0}', space=vmem, size = 0x4000, scoped, tag = 'output window, operand 0, single buffered']
    #allocation13 [shape = 's32[1]{0}', space=sflag, size = 0x4, scoped, tag = 'scoped memory for patch_embedding_forward.2']
    #allocation14 [shape = 'u8[16384]{0}', space=vmem, size = 0x4000, dematerialized = true, scoped, tag = 'FusionAdapter Buffer %fusion.1 = bf16[64,128]{1,0:T(8,128)(2,1)} fusion(%param_1.3, %param_2.2), kind=kLoop, calls=%fused_computation.2.clone, metadata={op_name="jit(patch_embedding_forward)/jit(_pad)/pad" stack_frame_id=11}']
    #allocation15 [shape = 'u8[512]{0}', space=vmem, size = 0x400, dematerialized = true, scoped, tag = 'FusionAdapter Buffer %fusion.2 = f32[1,128]{1,0:T(1,128)} fusion(%param_3.1, %param_4), kind=kLoop, calls=%fused_computation.3.clone, metadata={op_name="jit(patch_embedding_forward)/jit(_pad)/pad" stack_frame_id=13}']
    %16 = vsyncpa [#allocation13], 0
    // Predicated region
    $region2: #{patch_embedding_forward.2} parent=1 // pred_check
      _
    $region3: #{patch_embedding_forward.2} parent=1 // pred_check_branch
      %18 = sbr.rel (0) target = $region5
    $region4: #{patch_embedding_forward.2} parent=1 // pred_region
      _
    $region5: #{patch_embedding_forward.2} parent=1 // pred_fallthru
      _
    // Predicated region
    $region6: #{patch_embedding_forward.2} parent=1 // pred_check
      _
    $region7: #{patch_embedding_forward.2} parent=1 // pred_check_branch
      %20 = sbr.rel (0) target = $region9
    $region8: #{patch_embedding_forward.2} parent=1 // pred_region
      _
    $region9: #{patch_embedding_forward.2} parent=1 // pred_fallthru
      _
    // Predicated region
    $region10: #{patch_embedding_forward.2} parent=1 // pred_check
      _
    $region11: #{patch_embedding_forward.2} parent=1 // pred_check_branch
      %22 = sbr.rel (0) target = $region13
    $region12: #{patch_embedding_forward.2} parent=1 // pred_region
      _
    $region13: #{patch_embedding_forward.2} parent=1 // pred_fallthru
      _
    %s24 = sor.u32 255, 127
    %s25 = sand.u32 %s24, 85
    %s26 = sshrl.u32 %s25, 1
    %s27 = sor.u32 %s25, %s26
    %s28 = sand.u32 51, %s27
    %s29 = sshrl.u32 %s28, 2
    %s30 = sor.u32 %s28, %s29
    %s31 = sand.u32 15, %s30
    %v32 = vld [vmem:[%s1] sm:%s31]
    %v33 = vunpack.c.l.bf16 %v32
    %v34 = vunpack.c.h.bf16 %v32
    %v35 = vlaneseq
    %v36 = vand.u32 %v35, 127
    %vm38 = vcmp.lt.s32.totalorder %v36, 32
    %v39 = vsel %vm38, %v33, %v11
    %v40 = vpack.c.bf16 0.0, %v39
    %42 = vst [vmem:[#allocation14] sm:$0xf] %v40
    %s43 = scalar_lea.vmem %s1, 4
    %s45 = sor.u32 255, 127
    %s46 = sand.u32 %s45, 85
    %s47 = sshrl.u32 %s46, 1
    %s48 = sor.u32 %s46, %s47
    %s49 = sand.u32 51, %s48
    %s50 = sshrl.u32 %s49, 2
    %s51 = sor.u32 %s49, %s50
    %s52 = sand.u32 15, %s51
    %v53 = vld [vmem:[%s43] sm:%s52]
    %v54 = vunpack.c.l.bf16 %v53
    %v55 = vunpack.c.h.bf16 %v53
    %v56 = vlaneseq
    %v57 = vand.u32 %v56, 127
    %vm59 = vcmp.lt.s32.totalorder %v57, 32
    %v60 = vsel %vm59, %v54, %v11
    %s61 = scalar_lea.vmem [#allocation14], 4
    %v62 = vpack.c.bf16 0.0, %v60
    %64 = vst [vmem:[%s61] sm:$0xf] %v62
    %s65 = scalar_lea.vmem %s1, 8
    %s67 = sor.u32 255, 127
    %s68 = sand.u32 %s67, 85
    %s69 = sshrl.u32 %s68, 1
    %s70 = sor.u32 %s68, %s69
    %s71 = sand.u32 51, %s70
    %s72 = sshrl.u32 %s71, 2
    %s73 = sor.u32 %s71, %s72
    %s74 = sand.u32 15, %s73
    %v75 = vld [vmem:[%s65] sm:%s74]
    %v76 = vunpack.c.l.bf16 %v75
    %v77 = vunpack.c.h.bf16 %v75
    %v78 = vlaneseq
    %v79 = vand.u32 %v78, 127
    %vm81 = vcmp.lt.s32.totalorder %v79, 32
    %v82 = vsel %vm81, %v76, %v11
    %s83 = scalar_lea.vmem [#allocation14], 8
    %v84 = vpack.c.bf16 0.0, %v82
    %86 = vst [vmem:[%s83] sm:$0xf] %v84
    %s87 = scalar_lea.vmem %s1, 12
    %s89 = sor.u32 255, 127
    %s90 = sand.u32 %s89, 85
    %s91 = sshrl.u32 %s90, 1
    %s92 = sor.u32 %s90, %s91
    %s93 = sand.u32 51, %s92
    %s94 = sshrl.u32 %s93, 2
    %s95 = sor.u32 %s93, %s94
    %s96 = sand.u32 15, %s95
    %v97 = vld [vmem:[%s87] sm:%s96]
    %v98 = vunpack.c.l.bf16 %v97
    %v99 = vunpack.c.h.bf16 %v97
    %v100 = vlaneseq
    %v101 = vand.u32 %v100, 127
    %vm103 = vcmp.lt.s32.totalorder %v101, 32
    %v104 = vsel %vm103, %v98, %v11
    %s105 = scalar_lea.vmem [#allocation14], 12
    %v106 = vpack.c.bf16 0.0, %v104
    %108 = vst [vmem:[%s105] sm:$0xf] %v106
    %s109 = scalar_lea.vmem %s1, 16
    %s111 = sor.u32 255, 127
    %s112 = sand.u32 %s111, 85
    %s113 = sshrl.u32 %s112, 1
    %s114 = sor.u32 %s112, %s113
    %s115 = sand.u32 51, %s114
    %s116 = sshrl.u32 %s115, 2
    %s117 = sor.u32 %s115, %s116
    %s118 = sand.u32 15, %s117
    %v119 = vld [vmem:[%s109] sm:%s118]
    %v120 = vunpack.c.l.bf16 %v119
    %v121 = vunpack.c.h.bf16 %v119
    %v122 = vlaneseq
    %v123 = vand.u32 %v122, 127
    %vm125 = vcmp.lt.s32.totalorder %v123, 32
    %v126 = vsel %vm125, %v120, %v11
    %s127 = scalar_lea.vmem [#allocation14], 16
    %v128 = vpack.c.bf16 0.0, %v126
    %130 = vst [vmem:[%s127] sm:$0xf] %v128
    %s131 = scalar_lea.vmem %s1, 20
    %s133 = sor.u32 255, 127
    %s134 = sand.u32 %s133, 85
    %s135 = sshrl.u32 %s134, 1
    %s136 = sor.u32 %s134, %s135
    %s137 = sand.u32 51, %s136
    %s138 = sshrl.u32 %s137, 2
    %s139 = sor.u32 %s137, %s138
    %s140 = sand.u32 15, %s139
    %v141 = vld [vmem:[%s131] sm:%s140]
    %v142 = vunpack.c.l.bf16 %v141
    %v143 = vunpack.c.h.bf16 %v141
    %v144 = vlaneseq
    %v145 = vand.u32 %v144, 127
    %vm147 = vcmp.lt.s32.totalorder %v145, 32
    %v148 = vsel %vm147, %v142, %v11
    %s149 = scalar_lea.vmem [#allocation14], 20
    %v150 = vpack.c.bf16 0.0, %v148
    %152 = vst [vmem:[%s149] sm:$0xf] %v150
    %s153 = scalar_lea.vmem %s1, 24
    %s155 = sor.u32 255, 127
    %s156 = sand.u32 %s155, 85
    %s157 = sshrl.u32 %s156, 1
    %s158 = sor.u32 %s156, %s157
    %s159 = sand.u32 51, %s158
    %s160 = sshrl.u32 %s159, 2
    %s161 = sor.u32 %s159, %s160
    %s162 = sand.u32 15, %s161
    %v163 = vld [vmem:[%s153] sm:%s162]
    %v164 = vunpack.c.l.bf16 %v163
    %v165 = vunpack.c.h.bf16 %v163
    %v166 = vlaneseq
    %v167 = vand.u32 %v166, 127
    %vm169 = vcmp.lt.s32.totalorder %v167, 32
    %v170 = vsel %vm169, %v164, %v11
    %s171 = scalar_lea.vmem [#allocation14], 24
    %v172 = vpack.c.bf16 0.0, %v170
    %174 = vst [vmem:[%s171] sm:$0xf] %v172
    %s175 = scalar_lea.vmem %s1, 28
    %s177 = sor.u32 255, 127
    %s178 = sand.u32 %s177, 85
    %s179 = sshrl.u32 %s178, 1
    %s180 = sor.u32 %s178, %s179
    %s181 = sand.u32 51, %s180
    %s182 = sshrl.u32 %s181, 2
    %s183 = sor.u32 %s181, %s182
    %s184 = sand.u32 15, %s183
    %v185 = vld [vmem:[%s175] sm:%s184]
    %v186 = vunpack.c.l.bf16 %v185
    %v187 = vunpack.c.h.bf16 %v185
    %v188 = vlaneseq
    %v189 = vand.u32 %v188, 127
    %vm191 = vcmp.lt.s32.totalorder %v189, 32
    %v192 = vsel %vm191, %v186, %v11
    %s193 = scalar_lea.vmem [#allocation14], 28
    %v194 = vpack.c.bf16 0.0, %v192
    %196 = vst [vmem:[%s193] sm:$0xf] %v194
    %v197 = vld [vmem:[%s3] sm:$0x1]
    %v198 = vlaneseq
    %v199 = vshrl.u32 %v198, 7
    %vm201 = vcmp.lt.s32.totalorder %v199, 1
    %v202 = vsel %vm201, %v197, %v15
    %v203 = vlaneseq
    %v204 = vand.u32 %v203, 127
    %vm206 = vcmp.lt.s32.totalorder %v204, 32
    %v207 = vsel %vm206, %v202, %v15
    %209 = vst [vmem:[#allocation15] sm:$0x1] %v207
    %v211 = vld [vmem:[%s0] sm:$0xf]
    %v212 = vld [vmem:[%s0 + $0x4] sm:$0xf]
    %v213 = vld [vmem:[%s0 + $0x8] sm:$0xf]
    %v214 = vld [vmem:[%s0 + $0xc] sm:$0xf]
    %v215 = vld [vmem:[#allocation14] sm:$0xf]
    %v216 = vld [vmem:[#allocation14 + $0x4] sm:$0xf]
    %v217 = vld [vmem:[#allocation14 + $0x8] sm:$0xf]
    %v218 = vld [vmem:[#allocation14 + $0xc] sm:$0xf]
    %v219 = vld [vmem:[#allocation14 + $0x10] sm:$0xf]
    %v220 = vld [vmem:[#allocation14 + $0x14] sm:$0xf]
    %v221 = vld [vmem:[#allocation14 + $0x18] sm:$0xf]
    %v222 = vld [vmem:[#allocation14 + $0x1c] sm:$0xf]
    %v223 = vld [vmem:[#allocation15] sm:$0x1]
    %v225 = vlaneseq
    %v226 = vshrl.u32 %v225, 7
    %v227 = vsub.s32 0, %v226
    %v228 = vrot.slane %v223, %v227
    %v234 = vunpack.c.l.b16 %v211
    %v235 = vunpack.c.l.b16 %v212
    %v236 = vunpack.c.l.b16 %v213
    %v237 = vunpack.c.l.b16 %v214
    %v238 = vpack.c.b16 %v235, %v234
    %v239 = vpack.c.b16 %v237, %v236
    %v248 = vunpack.c.l.b16 %v215
    %v249 = vunpack.c.l.b16 %v216
    %v250 = vunpack.c.l.b16 %v217
    %v251 = vunpack.c.l.b16 %v218
    %v252 = vunpack.c.l.b16 %v219
    %v253 = vunpack.c.l.b16 %v220
    %v254 = vunpack.c.l.b16 %v221
    %v255 = vunpack.c.l.b16 %v222
    %v256 = vpack.c.b16 %v249, %v248
    %v257 = vpack.c.b16 %v251, %v250
    %v258 = vpack.c.b16 %v253, %v252
    %v259 = vpack.c.b16 %v255, %v254
    %vm264 = vcmask 523264
    %v266 = vsel %vm264, %v238, 0
    %v269 = vsel %vm264, %v239, 0
    %271 = vmatprep.subr.bf16.mxu0 0
    %272 = vmatpush1.bf16.msra.mxu0 %v256
    %273 = vmatprep.subr.bf16.mxu0 0
    %274 = vmatpush1.bf16.msra.mxu0 %v257
    %275 = vmatprep.subr.bf16.mxu0 0
    %276 = vmatpush1.bf16.msra.mxu0 %v258
    %277 = vmatprep.subr.bf16.mxu0 0
    %278 = vmatpush1.bf16.msra.mxu0 %v259
    %279 = vmatprep.subr.bf16.mxu0 0
    %280 = vmatpush1.bf16.msra.mxu0 0
    %281 = vmatprep.subr.bf16.mxu0 0
    %282 = vmatpush1.bf16.msra.mxu0 0
    %283 = vmatprep.subr.bf16.mxu0 0
    %284 = vmatpush1.bf16.msra.mxu0 0
    %285 = vmatprep.subr.bf16.mxu0 0
    %286 = vmatpush1.bf16.msra.mxu0 0
    %287 = vmatprep.subr.bf16.mxu0 0
    %288 = vmatpush1.bf16.msra.mxu0 0
    %289 = vmatprep.subr.bf16.mxu0 0
    %290 = vmatpush1.bf16.msra.mxu0 0
    %291 = vmatprep.subr.bf16.mxu0 0
    %292 = vmatpush1.bf16.msra.mxu0 0
    %293 = vmatprep.subr.bf16.mxu0 0
    %294 = vmatpush1.bf16.msra.mxu0 0
    %295 = vmatprep.subr.bf16.mxu0 0
    %296 = vmatpush1.bf16.msra.mxu0 0
    %297 = vmatprep.subr.bf16.mxu0 0
    %298 = vmatpush1.bf16.msra.mxu0 0
    %299 = vmatprep.subr.bf16.mxu0 0
    %300 = vmatpush1.bf16.msra.mxu0 0
    %301 = vmatprep.subr.bf16.mxu0 0
    %302 = vmatpush1.bf16.msra.mxu0 0
    %303 = vmatprep.mubr.bf16.mxu0 0
    %304 = vmatmul.mubr.bf16.gmra.mrb[0].mxu0 %v266
    %v305 = vpop.f32.mrb[0].mxu0
    %v306 = vadd.f32 %v228, %v305
    %v307 = vpop.f32.mrb[0].mxu0
    %v308 = vpop.f32.mrb[0].mxu0
    %v309 = vadd.f32 %v228, %v308
    %v310 = vpop.f32.mrb[0].mxu0
    %311 = vmatprep.mubr.bf16.mxu0 0
    %312 = vmatmul.mubr.bf16.gmra.mrb[0].mxu0 %v269
    %v313 = vpop.f32.mrb[0].mxu0
    %v314 = vadd.f32 %v228, %v313
    %v315 = vpop.f32.mrb[0].mxu0
    %v316 = vpop.f32.mrb[0].mxu0
    %v317 = vadd.f32 %v228, %v316
    %v318 = vpop.f32.mrb[0].mxu0
    %319 = vdwg.mxu0
    %320 = vst [vmem:[#allocation12] sm:$0xff] %v306
    %321 = vst [vmem:[#allocation12 + $0x8] sm:$0xff] %v309
    %322 = vst [vmem:[#allocation12 + $0x10] sm:$0xff] %v314
    %323 = vst [vmem:[#allocation12 + $0x18] sm:$0xff] %v317
    // Predicated region
    $region14: #{patch_embedding_forward.2} parent=1 // pred_check
      _
    $region15: #{patch_embedding_forward.2} parent=1 // pred_check_branch
      %325 = sbr.rel (0) target = $region17
    $region16: #{patch_embedding_forward.2} parent=1 // pred_region
      %s327 = ssub.s32 512, 512
      %328 = vsyncadd [#allocation13], %s327
      %s329 = sshll.u32 [#allocation12], 4
      %s330 = int_to_ptr.vmem [resolvable:$true] %s329
      %335 = dma.vmem_to_hbm [thread:$0]  %s330, 512, %s5, [#allocation13], 128, 128, 8
    $region17: #{patch_embedding_forward.2} parent=1 // pred_fallthru
      _
    // Predicated region
    $region18: #{patch_embedding_forward.2} parent=1 // pred_check
      _
    $region19: #{patch_embedding_forward.2} parent=1 // pred_check_branch
      %337 = sbr.rel (0) target = $region21
    $region20: #{patch_embedding_forward.2} parent=1 // pred_region
      %338 = dma.done [#allocation13], 512
    $region21: #{patch_embedding_forward.2} parent=1 // pred_fallthru
      _
    %339 = vsyncpa [#allocation13], 1

</llo_original>
